<compile_context>
chip_gen: v7x
topology: tpu7x:2x2x1
jax: 0.10.0
libtpu: 0.0.40
codegen_flags: <defaults>
</compile_context>

<pallas_src>
import functools

import jax
import jax.numpy as jnp
from jax.experimental import pallas as pl
from jax.experimental.pallas import tpu as pltpu

# torchvision rgb_to_grayscale coefficients
_R_W = 0.2989
_G_W = 0.587
_B_W = 0.114


def grayscale_kernel(x_ref, o_ref, *, hw):
    # x_ref block: [TB, 3*HW]  (rows on sublanes, full RGB frame on lanes)
    x = x_ref[...]
    if not jnp.issubdtype(x_ref.dtype, jnp.floating):
        x = x.astype(jnp.float32)

    r = x[:, 0:hw]
    g = x[:, hw:2 * hw]
    b = x[:, 2 * hw:3 * hw]
    gray = (_R_W * r + _G_W * g + _B_W * b).astype(o_ref.dtype)  # [TB, HW]

    # Three full lane-range, unmasked stores (HW is lane-aligned at test size).
    o_ref[:, 0:hw] = gray
    o_ref[:, hw:2 * hw] = gray
    o_ref[:, 2 * hw:3 * hw] = gray


def grayscale_forward(obs):
    """obs: [B, C, H, W] array, C % 3 == 0, H == W."""
    B, C, H, W = obs.shape
    assert H == W, "Grayscale expects square frames (h == w)"
    assert C % 3 == 0, "channel count must be a multiple of 3"
    num_frames = C // 3
    N = B * num_frames
    HW = H * W
    ROW = 3 * HW

    # Zero-copy contiguous view: [B, F*3, H, W] -> [N, 3*HW]  (lane-dense)
    # TODO(synk): if HW % 128 != 0 (e.g. 84x84 frames) the in-kernel lane
    # slices are unaligned; padding HW to a multiple of 128 in the wrapper
    # would keep every store unmasked, at the cost of one pad copy.
    x = obs.reshape(N, ROW)

    elem_bytes = jnp.dtype(obs.dtype).itemsize
    pack = max(8, 32 // elem_bytes)          # sublane packing: 8 f32 / 16 bf16 / 32 i8
    row_bytes = ROW * elem_bytes

    # 2 double-buffered input blocks + 2 double-buffered output blocks per
    # grid step must fit the default scoped VMEM on all generations.
    total_budget = 12 * 1024 * 1024
    rows_per_budget = max(1, total_budget // (4 * row_bytes))

    if N <= rows_per_budget:
        tb = N
        # If a single tile would cover a large N, split into >=4 grid steps so
        # v7x's two TensorCores both get work and per-step overhead is hidden.
        if N >= 4 * pack:
            t = -(-N // 4)                           # ceil(N / 4)
            t = ((t + pack - 1) // pack) * pack      # round up to packing
            tb = min(N, t)
    else:
        tb = max(pack, (rows_per_budget // pack) * pack)

    if tb < N:
        # Prefer a tile (multiple of the packing) that divides N evenly so the
        # last tile is not a padded remainder.
        cand = tb
        while cand >= pack:
            if N % cand == 0:
                tb = cand
                break
            cand -= pack

    grid = (pl.cdiv(N, tb),)

    out = pl.pallas_call(
        functools.partial(grayscale_kernel, hw=HW),
        out_shape=jax.ShapeDtypeStruct((N, ROW), obs.dtype),
        grid=grid,
        in_specs=[pl.BlockSpec((tb, ROW), lambda i: (i, 0))],
        out_specs=pl.BlockSpec((tb, ROW), lambda i: (i, 0)),
        compiler_params=pltpu.CompilerParams(
            dimension_semantics=("parallel",),
        ),
    )(x)

    return out.reshape(B, C, H, W)


def reference_grayscale(obs):
    B, C, H, W = obs.shape
    num_frames = C // 3
    x = obs.reshape(B, num_frames, 3, H, W)
    gray = _R_W * x[:, :, 0] + _G_W * x[:, :, 1] + _B_W * x[:, :, 2]
    out = jnp.broadcast_to(gray[:, :, None, :, :], (B, num_frames, 3, H, W))
    return out.reshape(B, C, H, W).astype(obs.dtype)


if __name__ == "__main__":
    # Small shapes consistent with the module: 2 stacked RGB frames (C = 6).
    B, C, H, W = 2, 6, 16, 16

    key = jax.random.PRNGKey(0)
    obs = jax.random.uniform(key, (B, C, H, W), jnp.float32)

    out = grayscale_forward(obs)
    out = jax.block_until_ready(out)

    ref = reference_grayscale(obs)
    assert out.shape == (B, C, H, W)
    assert jnp.allclose(out, ref, atol=1e-6, rtol=1e-6)

    # Each output frame's 3 channels must be identical (gray replicated).
    out_frames = out.reshape(B, C // 3, 3, H, W)
    assert jnp.allclose(out_frames[:, :, 0], out_frames[:, :, 1], atol=1e-6)
    assert jnp.allclose(out_frames[:, :, 0], out_frames[:, :, 2], atol=1e-6)

    print("KERNEL_OK")
</pallas_src>

<mosaic_0001>
module attributes {stable_mosaic.version = 11 : i64} {
  func.func @grayscale_kernel(%arg0: i32, %arg1: memref<4x768xf32, #tpu.memory_space<vmem>>, %arg2: memref<4x768xf32, #tpu.memory_space<vmem>>) attributes {dimension_semantics = [#tpu.dimension_semantics<parallel>], iteration_bounds = array<i64: 1>, scalar_prefetch = 0 : i64, scratch_operands = 0 : i64, tpu.core_type = #tpu.core_type<tc>, window_params = [{transform_indices = @transform_0, window_bounds = array<i64: 4, 768>}, {transform_indices = @transform_1, window_bounds = array<i64: 4, 768>}]} {
    %c0 = arith.constant 0 : index
    %c0_0 = arith.constant 0 : index
    %0 = vector.load %arg1[%c0, %c0_0] : memref<4x768xf32, #tpu.memory_space<vmem>>, vector<4x768xf32>
    %1 = vector.extract_strided_slice %0 {offsets = [0, 0], sizes = [4, 256], strides = [1, 1]} : vector<4x768xf32> to vector<4x256xf32>
    %2 = vector.extract_strided_slice %0 {offsets = [0, 256], sizes = [4, 256], strides = [1, 1]} : vector<4x768xf32> to vector<4x256xf32>
    %3 = vector.extract_strided_slice %0 {offsets = [0, 512], sizes = [4, 256], strides = [1, 1]} : vector<4x768xf32> to vector<4x256xf32>
    %cst = arith.constant 2.989000e-01 : f32
    %4 = vector.broadcast %cst : f32 to vector<4x256xf32>
    %5 = arith.mulf %4, %1 : vector<4x256xf32>
    %cst_1 = arith.constant 5.870000e-01 : f32
    %6 = vector.broadcast %cst_1 : f32 to vector<4x256xf32>
    %7 = arith.mulf %6, %2 : vector<4x256xf32>
    %8 = arith.addf %5, %7 : vector<4x256xf32>
    %cst_2 = arith.constant 1.140000e-01 : f32
    %9 = vector.broadcast %cst_2 : f32 to vector<4x256xf32>
    %10 = arith.mulf %9, %3 : vector<4x256xf32>
    %11 = arith.addf %8, %10 : vector<4x256xf32>
    %c0_3 = arith.constant 0 : index
    %c0_4 = arith.constant 0 : index
    %12 = vector.load %arg2[%c0_3, %c0_4] : memref<4x768xf32, #tpu.memory_space<vmem>>, vector<4x256xf32>
    tpu.vector_store %arg2[%c0_3, %c0_4], %11 {strides = array<i32>} : memref<4x768xf32, #tpu.memory_space<vmem>>, vector<4x256xf32>,
    %c0_5 = arith.constant 0 : index
    %c256 = arith.constant 256 : index
    %13 = vector.load %arg2[%c0_5, %c256] : memref<4x768xf32, #tpu.memory_space<vmem>>, vector<4x256xf32>
    tpu.vector_store %arg2[%c0_5, %c256], %11 {strides = array<i32>} : memref<4x768xf32, #tpu.memory_space<vmem>>, vector<4x256xf32>,
    %c0_6 = arith.constant 0 : index
    %c512 = arith.constant 512 : index
    %14 = vector.load %arg2[%c0_6, %c512] : memref<4x768xf32, #tpu.memory_space<vmem>>, vector<4x256xf32>
    tpu.vector_store %arg2[%c0_6, %c512], %11 {strides = array<i32>} : memref<4x768xf32, #tpu.memory_space<vmem>>, vector<4x256xf32>,
    return
  }
  func.func @transform_0(%arg0: i32) -> (i32, i32) {
    %c0_i32 = arith.constant 0 : i32
    %c0_i32_0 = arith.constant 0 : i32
    return %arg0, %c0_i32 : i32, i32
  }
  func.func @transform_1(%arg0: i32) -> (i32, i32) {
    %c0_i32 = arith.constant 0 : i32
    %c0_i32_0 = arith.constant 0 : i32
    return %arg0, %c0_i32 : i32, i32
  }
}

</mosaic_0001>

<llo_original>
// kernel: tpu_custom_call.1
$region0: #{tpu_custom_call.1}
  #allocation0 [shape = 'u32[]', space=smem, size = 0x4, offset = 0x4, fixed_abs, tag = 'smem constant byte address 0x4 - core index']
  #allocation1 [shape = 'u32[144,128]{1,0:T(1,128)}', space=vmem, size = 0x12000, scoped, tag = 'internal scratch']
  %s0 = inlined_call_operand.hbm [shape: f32[4,768], index: 0, kind: input, shape index: {}]
  %s1 = inlined_call_operand.hbm [shape: f32[4,768], index: 1, kind: output, shape index: {}]
  %s2 = sld [smem:[#allocation0]]
  $region18: #{tpu_custom_call.1} parent=0
    _
  %s4 = ssub.s32 1, %s2
  %s5 = scalar_select 0, %s4, %s2
  $region1: #{tpu_custom_call.1} parent=0
    #allocation2 [shape = 'u8[12288]{0}', space=vmem, size = 0x3000, scoped, tag = 'input window, operand 0, single buffered']
    #allocation3 [shape = 's32[1]{0}', space=sflag, size = 0x4, scoped, tag = 'scoped memory for tpu_custom_call.1']
    #allocation4 [shape = 's32[1]{0}', space=sflag, size = 0x4, scoped, tag = 'scoped memory for tpu_custom_call.1']
    #allocation5 [shape = 'u8[12288]{0}', space=vmem, size = 0x3000, scoped, tag = 'output window, operand 0, single buffered']
    %6 = vsyncpa [#allocation3], 0
    %7 = vsyncpa [#allocation4], 0
    // Predicated region
    $region2: #{tpu_custom_call.1} parent=1 // pred_check
      _
    $region3: #{tpu_custom_call.1} parent=1 // pred_check_branch
      %9 = sbr.rel (0) target = $region5
    $region4: #{tpu_custom_call.1} parent=1 // pred_region
      %s11 = ssub.s32 384, 384
      %12 = vsyncadd [#allocation3], %s11
      %s14 = sshll.u32 [#allocation2], 4
      %s15 = int_to_ptr.vmem [resolvable:$true] %s14
      %17 = dma.hbm_to_vmem [thread:$0]  %s0, 384, %s15, [#allocation3]
    $region5: #{tpu_custom_call.1} parent=1 // pred_fallthru
      _
    // Predicated region
    $region6: #{tpu_custom_call.1} parent=1 // pred_check
      _
    $region7: #{tpu_custom_call.1} parent=1 // pred_check_branch
      %19 = sbr.rel (0) target = $region9
    $region8: #{tpu_custom_call.1} parent=1 // pred_region
      %20 = dma.done [#allocation3], 384
    $region9: #{tpu_custom_call.1} parent=1 // pred_fallthru
      _
    %v21 = vld [vmem:[#allocation2] sm:$0xff]
    %v22 = vld [vmem:[#allocation2 + $0x8] sm:$0xff]
    %v23 = vld [vmem:[#allocation2 + $0x10] sm:$0xff]
    %v24 = vmul.f32 %v21, 0.2989
    %v25 = vmul.f32 %v22, 0.587
    %v26 = vadd.f32 %v24, %v25
    %v27 = vmul.f32 %v23, 0.114
    %v28 = vadd.f32 %v26, %v27
    %29 = vst [vmem:[#allocation5] sm:$0xff] %v28
    %30 = vst [vmem:[#allocation5 + $0x8] sm:$0xff] %v28
    %31 = vst [vmem:[#allocation5 + $0x10] sm:$0xff] %v28
    // Predicated region
    $region10: #{tpu_custom_call.1} parent=1 // pred_check
      _
    $region11: #{tpu_custom_call.1} parent=1 // pred_check_branch
      %33 = sbr.rel (0) target = $region13
    $region12: #{tpu_custom_call.1} parent=1 // pred_region
      %s35 = ssub.s32 384, 384
      %36 = vsyncadd [#allocation4], %s35
      %s38 = sshll.u32 [#allocation5], 4
      %s39 = int_to_ptr.vmem [resolvable:$true] %s38
      %41 = dma.vmem_to_hbm [thread:$0]  %s39, 384, %s1, [#allocation4]
    $region13: #{tpu_custom_call.1} parent=1 // pred_fallthru
      _
    // Predicated region
    $region14: #{tpu_custom_call.1} parent=1 // pred_check
      _
    $region15: #{tpu_custom_call.1} parent=1 // pred_check_branch
      %43 = sbr.rel (0) target = $region17
    $region16: #{tpu_custom_call.1} parent=1 // pred_region
      %44 = dma.done [#allocation4], 384
    $region17: #{tpu_custom_call.1} parent=1 // pred_fallthru
      _
    %45 = vsyncpa [#allocation3], 1
    %46 = vsyncpa [#allocation4], 1

</llo_original>
